<compile_context>
chip_gen: v5e
topology: v5e:2x2
jax: 0.10.0
libtpu: 0.0.40
codegen_flags: <defaults>
</compile_context>

<pallas_src>
import functools

import jax
import jax.numpy as jnp
from jax.experimental import pallas as pl
from jax.experimental.pallas import tpu as pltpu


def _round_up(n, m):
    return ((n + m - 1) // m) * m


def shape_disc_kernel(x_ref, w1_ref, b1_ref, w2_ref, b2_ref, w3_ref, b3_ref,
                      o_ref):
    """One batch tile, feature-major: x (10, TB) -> out (1, TB)."""
    x = x_ref[...]            # (10, TB) f32, batch on lanes
    w1 = w1_ref[...]          # (10, 10)  (out, in) -- PyTorch layout
    b1 = b1_ref[...]          # (10, 1)
    w2 = w2_ref[...]          # (5, 10)
    b2 = b2_ref[...]          # (5, 1)
    w3 = w3_ref[...]          # (1, 5)
    b3 = b3_ref[...]          # (1, 1)

    # ---- Linear(10,10) + ReLU : VPU broadcast-FMA over the 10 input feats ----
    acc1 = w1[:, 0:1] * x[0:1, :]                     # (10,1)*(1,TB) -> (10,TB)
    for k in range(1, 10):
        acc1 = acc1 + w1[:, k:k + 1] * x[k:k + 1, :]
    h1 = jnp.maximum(acc1 + b1, 0.0)                  # (10, TB)

    # ---- Linear(10,5) + ReLU ----
    acc2 = w2[:, 0:1] * h1[0:1, :]                    # (5, TB)
    for k in range(1, 10):
        acc2 = acc2 + w2[:, k:k + 1] * h1[k:k + 1, :]
    h2 = jnp.maximum(acc2 + b2, 0.0)                  # (5, TB)

    # ---- Linear(5,1) ----
    acc3 = w3[:, 0:1] * h2[0:1, :]                    # (1, TB)
    for k in range(1, 5):
        acc3 = acc3 + w3[:, k:k + 1] * h2[k:k + 1, :]
    logit = acc3 + b3                                 # (1, TB)

    # ---- Sigmoid: exp on EUP, approx reciprocal on EUP (VPU stays free) ----
    o_ref[...] = pl.reciprocal(1.0 + jnp.exp(-logit), approx=True)


def prepare_params(params):
    """One-time layout plumbing (kept out of the per-call graph).

    PyTorch Linear stores W as (out, in); in feature-major layout we compute
    h = W @ x directly, so weights are used as-is and only biases get a
    trailing broadcast axis.
    """
    return (
        params["w1"],                         # (10, 10)
        params["b1"].reshape(10, 1),          # (10, 1)
        params["w2"],                         # (5, 10)
        params["b2"].reshape(5, 1),           # (5, 1)
        params["w3"],                         # (1, 5)
        params["b3"].reshape(1, 1),           # (1, 1)
    )


@functools.partial(jax.jit, static_argnames=("tb",))
def shape_discriminator(x, prepped, *, tb=512):
    """x: (B, 10) float32 (PyTorch convention). Returns (B, 1) sigmoid scores."""
    w1, b1, w2, b2, w3, b3 = prepped
    B, F = x.shape
    assert F == 10, F

    # Feature-major, lane-dense: batch goes on the 128-wide lane axis.
    xt = x.T                                          # (10, B)
    tb = min(tb, _round_up(B, 128))                   # tile is a multiple of 128
    b_pad = _round_up(B, tb)
    if b_pad != B:
        xt = jnp.pad(xt, ((0, 0), (0, b_pad - B)))    # zero-pad ragged last tile

    grid = (b_pad // tb,)

    out = pl.pallas_call(
        shape_disc_kernel,
        out_shape=jax.ShapeDtypeStruct((1, b_pad), jnp.float32),
        grid_spec=pltpu.PrefetchScalarGridSpec(
            num_scalar_prefetch=0,
            grid=grid,
            in_specs=[
                # batch-tiled, lane-dense input
                pl.BlockSpec((10, tb), lambda i: (0, i)),
                # weights/biases: constant block index -> DMA'd once, stay resident
                pl.BlockSpec((10, 10), lambda i: (0, 0)),
                pl.BlockSpec((10, 1), lambda i: (0, 0)),
                pl.BlockSpec((5, 10), lambda i: (0, 0)),
                pl.BlockSpec((5, 1), lambda i: (0, 0)),
                pl.BlockSpec((1, 5), lambda i: (0, 0)),
                pl.BlockSpec((1, 1), lambda i: (0, 0)),
            ],
            out_specs=pl.BlockSpec((1, tb), lambda i: (0, i)),   # lane-dense store
        ),
        compiler_params=pltpu.CompilerParams(
            dimension_semantics=("parallel",),      # megacore split on v7x
        ),
    )(xt, w1, b1, w2, b2, w3, b3)

    # Drop the zero-padded tail rows and restore PyTorch's (B, 1) shape.
    return out[0, :B].reshape(B, 1)


def init_params(key):
    """Deterministic init mimicking PyTorch Linear default (uniform +-1/sqrt(fan_in))."""
    ks = jax.random.split(key, 6)

    def u(k, shape, fan_in):
        bound = 1.0 / jnp.sqrt(fan_in)
        return jax.random.uniform(k, shape, jnp.float32, -bound, bound)

    return {
        "w1": u(ks[0], (10, 10), 10.0),
        "b1": u(ks[1], (10,), 10.0),
        "w2": u(ks[2], (5, 10), 10.0),
        "b2": u(ks[3], (5,), 10.0),
        "w3": u(ks[4], (1, 5), 5.0),
        "b3": u(ks[5], (1,), 5.0),
    }


def reference_forward(x, p):
    """Pure-JAX reference matching the PyTorch module semantics."""
    h1 = jnp.maximum(x @ p["w1"].T + p["b1"], 0.0)
    h2 = jnp.maximum(h1 @ p["w2"].T + p["b2"], 0.0)
    logit = h2 @ p["w3"].T + p["b3"]
    return jax.nn.sigmoid(logit)


if __name__ == "__main__":
    key = jax.random.PRNGKey(0)
    k_param, k_x = jax.random.split(key)

    params = init_params(k_param)
    prepped = prepare_params(params)

    # Small but non-trivial batch: exercises padding (1000 -> 1024) and a
    # multi-step batch grid (2 tiles of 512).
    B = 1000
    x = jax.random.normal(k_x, (B, 10), dtype=jnp.float32)

    out = jax.block_until_ready(shape_discriminator(x, prepped, tb=512))
    ref = reference_forward(x, params)

    assert out.shape == (B, 1), out.shape
    assert bool(jnp.all(jnp.isfinite(out)))
    # approx-reciprocal sigmoid -> relaxed (but still tight) tolerance
    max_err = float(jnp.max(jnp.abs(out - ref)))
    assert jnp.allclose(out, ref, atol=1e-3, rtol=1e-3), max_err

    print("KERNEL_OK")
</pallas_src>

<mosaic_0001>
module attributes {stable_mosaic.version = 11 : i64} {
  func.func @shape_disc_kernel(%arg0: i32, %arg1: memref<10x512xf32, #tpu.memory_space<vmem>>, %arg2: memref<10x10xf32, #tpu.memory_space<vmem>>, %arg3: memref<10x1xf32, #tpu.memory_space<vmem>>, %arg4: memref<5x10xf32, #tpu.memory_space<vmem>>, %arg5: memref<5x1xf32, #tpu.memory_space<vmem>>, %arg6: memref<1x5xf32, #tpu.memory_space<vmem>>, %arg7: memref<1x1xf32, #tpu.memory_space<vmem>>, %arg8: memref<1x512xf32, #tpu.memory_space<vmem>>) attributes {dimension_semantics = [#tpu.dimension_semantics<parallel>], iteration_bounds = array<i64: 2>, scalar_prefetch = 0 : i64, scratch_operands = 0 : i64, tpu.core_type = #tpu.core_type<tc>, window_params = [{transform_indices = @transform_0, window_bounds = array<i64: 10, 512>}, {pipeline_mode = #tpu.pipeline_mode<synchronous>, transform_indices = @transform_1, window_bounds = array<i64: 10, 10>}, {pipeline_mode = #tpu.pipeline_mode<synchronous>, transform_indices = @transform_2, window_bounds = array<i64: 10, 1>}, {pipeline_mode = #tpu.pipeline_mode<synchronous>, transform_indices = @transform_3, window_bounds = array<i64: 5, 10>}, {pipeline_mode = #tpu.pipeline_mode<synchronous>, transform_indices = @transform_4, window_bounds = array<i64: 5, 1>}, {pipeline_mode = #tpu.pipeline_mode<synchronous>, transform_indices = @transform_5, window_bounds = array<i64: 1, 5>}, {pipeline_mode = #tpu.pipeline_mode<synchronous>, transform_indices = @transform_6, window_bounds = array<i64: 1, 1>}, {transform_indices = @transform_7, window_bounds = array<i64: 1, 512>}]} {
    %c0 = arith.constant 0 : index
    %c0_0 = arith.constant 0 : index
    %0 = vector.load %arg1[%c0, %c0_0] : memref<10x512xf32, #tpu.memory_space<vmem>>, vector<10x512xf32>
    %c0_1 = arith.constant 0 : index
    %c0_2 = arith.constant 0 : index
    %1 = vector.load %arg2[%c0_1, %c0_2] : memref<10x10xf32, #tpu.memory_space<vmem>>, vector<10x10xf32>
    %c0_3 = arith.constant 0 : index
    %c0_4 = arith.constant 0 : index
    %2 = vector.load %arg3[%c0_3, %c0_4] : memref<10x1xf32, #tpu.memory_space<vmem>>, vector<10x1xf32>
    %c0_5 = arith.constant 0 : index
    %c0_6 = arith.constant 0 : index
    %3 = vector.load %arg4[%c0_5, %c0_6] : memref<5x10xf32, #tpu.memory_space<vmem>>, vector<5x10xf32>
    %c0_7 = arith.constant 0 : index
    %c0_8 = arith.constant 0 : index
    %4 = vector.load %arg5[%c0_7, %c0_8] : memref<5x1xf32, #tpu.memory_space<vmem>>, vector<5x1xf32>
    %c0_9 = arith.constant 0 : index
    %c0_10 = arith.constant 0 : index
    %5 = vector.load %arg6[%c0_9, %c0_10] : memref<1x5xf32, #tpu.memory_space<vmem>>, vector<1x5xf32>
    %c0_11 = arith.constant 0 : index
    %c0_12 = arith.constant 0 : index
    %6 = vector.load %arg7[%c0_11, %c0_12] : memref<1x1xf32, #tpu.memory_space<vmem>>, vector<1x1xf32>
    %7 = vector.extract_strided_slice %1 {offsets = [0, 0], sizes = [10, 1], strides = [1, 1]} : vector<10x10xf32> to vector<10x1xf32>
    %8 = vector.extract_strided_slice %0 {offsets = [0, 0], sizes = [1, 512], strides = [1, 1]} : vector<10x512xf32> to vector<1x512xf32>
    %9 = vector.broadcast %7 : vector<10x1xf32> to vector<10x512xf32>
    %10 = vector.broadcast %8 : vector<1x512xf32> to vector<10x512xf32>
    %11 = arith.mulf %9, %10 : vector<10x512xf32>
    %12 = vector.extract_strided_slice %1 {offsets = [0, 1], sizes = [10, 1], strides = [1, 1]} : vector<10x10xf32> to vector<10x1xf32>
    %13 = vector.extract_strided_slice %0 {offsets = [1, 0], sizes = [1, 512], strides = [1, 1]} : vector<10x512xf32> to vector<1x512xf32>
    %14 = vector.broadcast %12 : vector<10x1xf32> to vector<10x512xf32>
    %15 = vector.broadcast %13 : vector<1x512xf32> to vector<10x512xf32>
    %16 = arith.mulf %14, %15 : vector<10x512xf32>
    %17 = arith.addf %11, %16 : vector<10x512xf32>
    %18 = vector.extract_strided_slice %1 {offsets = [0, 2], sizes = [10, 1], strides = [1, 1]} : vector<10x10xf32> to vector<10x1xf32>
    %19 = vector.extract_strided_slice %0 {offsets = [2, 0], sizes = [1, 512], strides = [1, 1]} : vector<10x512xf32> to vector<1x512xf32>
    %20 = vector.broadcast %18 : vector<10x1xf32> to vector<10x512xf32>
    %21 = vector.broadcast %19 : vector<1x512xf32> to vector<10x512xf32>
    %22 = arith.mulf %20, %21 : vector<10x512xf32>
    %23 = arith.addf %17, %22 : vector<10x512xf32>
    %24 = vector.extract_strided_slice %1 {offsets = [0, 3], sizes = [10, 1], strides = [1, 1]} : vector<10x10xf32> to vector<10x1xf32>
    %25 = vector.extract_strided_slice %0 {offsets = [3, 0], sizes = [1, 512], strides = [1, 1]} : vector<10x512xf32> to vector<1x512xf32>
    %26 = vector.broadcast %24 : vector<10x1xf32> to vector<10x512xf32>
    %27 = vector.broadcast %25 : vector<1x512xf32> to vector<10x512xf32>
    %28 = arith.mulf %26, %27 : vector<10x512xf32>
    %29 = arith.addf %23, %28 : vector<10x512xf32>
    %30 = vector.extract_strided_slice %1 {offsets = [0, 4], sizes = [10, 1], strides = [1, 1]} : vector<10x10xf32> to vector<10x1xf32>
    %31 = vector.extract_strided_slice %0 {offsets = [4, 0], sizes = [1, 512], strides = [1, 1]} : vector<10x512xf32> to vector<1x512xf32>
    %32 = vector.broadcast %30 : vector<10x1xf32> to vector<10x512xf32>
    %33 = vector.broadcast %31 : vector<1x512xf32> to vector<10x512xf32>
    %34 = arith.mulf %32, %33 : vector<10x512xf32>
    %35 = arith.addf %29, %34 : vector<10x512xf32>
    %36 = vector.extract_strided_slice %1 {offsets = [0, 5], sizes = [10, 1], strides = [1, 1]} : vector<10x10xf32> to vector<10x1xf32>
    %37 = vector.extract_strided_slice %0 {offsets = [5, 0], sizes = [1, 512], strides = [1, 1]} : vector<10x512xf32> to vector<1x512xf32>
    %38 = vector.broadcast %36 : vector<10x1xf32> to vector<10x512xf32>
    %39 = vector.broadcast %37 : vector<1x512xf32> to vector<10x512xf32>
    %40 = arith.mulf %38, %39 : vector<10x512xf32>
    %41 = arith.addf %35, %40 : vector<10x512xf32>
    %42 = vector.extract_strided_slice %1 {offsets = [0, 6], sizes = [10, 1], strides = [1, 1]} : vector<10x10xf32> to vector<10x1xf32>
    %43 = vector.extract_strided_slice %0 {offsets = [6, 0], sizes = [1, 512], strides = [1, 1]} : vector<10x512xf32> to vector<1x512xf32>
    %44 = vector.broadcast %42 : vector<10x1xf32> to vector<10x512xf32>
    %45 = vector.broadcast %43 : vector<1x512xf32> to vector<10x512xf32>
    %46 = arith.mulf %44, %45 : vector<10x512xf32>
    %47 = arith.addf %41, %46 : vector<10x512xf32>
    %48 = vector.extract_strided_slice %1 {offsets = [0, 7], sizes = [10, 1], strides = [1, 1]} : vector<10x10xf32> to vector<10x1xf32>
    %49 = vector.extract_strided_slice %0 {offsets = [7, 0], sizes = [1, 512], strides = [1, 1]} : vector<10x512xf32> to vector<1x512xf32>
    %50 = vector.broadcast %48 : vector<10x1xf32> to vector<10x512xf32>
    %51 = vector.broadcast %49 : vector<1x512xf32> to vector<10x512xf32>
    %52 = arith.mulf %50, %51 : vector<10x512xf32>
    %53 = arith.addf %47, %52 : vector<10x512xf32>
    %54 = vector.extract_strided_slice %1 {offsets = [0, 8], sizes = [10, 1], strides = [1, 1]} : vector<10x10xf32> to vector<10x1xf32>
    %55 = vector.extract_strided_slice %0 {offsets = [8, 0], sizes = [1, 512], strides = [1, 1]} : vector<10x512xf32> to vector<1x512xf32>
    %56 = vector.broadcast %54 : vector<10x1xf32> to vector<10x512xf32>
    %57 = vector.broadcast %55 : vector<1x512xf32> to vector<10x512xf32>
    %58 = arith.mulf %56, %57 : vector<10x512xf32>
    %59 = arith.addf %53, %58 : vector<10x512xf32>
    %60 = vector.extract_strided_slice %1 {offsets = [0, 9], sizes = [10, 1], strides = [1, 1]} : vector<10x10xf32> to vector<10x1xf32>
    %61 = vector.extract_strided_slice %0 {offsets = [9, 0], sizes = [1, 512], strides = [1, 1]} : vector<10x512xf32> to vector<1x512xf32>
    %62 = vector.broadcast %60 : vector<10x1xf32> to vector<10x512xf32>
    %63 = vector.broadcast %61 : vector<1x512xf32> to vector<10x512xf32>
    %64 = arith.mulf %62, %63 : vector<10x512xf32>
    %65 = arith.addf %59, %64 : vector<10x512xf32>
    %66 = vector.broadcast %2 : vector<10x1xf32> to vector<10x512xf32>
    %67 = arith.addf %65, %66 : vector<10x512xf32>
    %cst = arith.constant 0.000000e+00 : f32
    %68 = vector.broadcast %cst : f32 to vector<10x512xf32>
    %69 = arith.maximumf %67, %68 : vector<10x512xf32>
    %70 = vector.extract_strided_slice %3 {offsets = [0, 0], sizes = [5, 1], strides = [1, 1]} : vector<5x10xf32> to vector<5x1xf32>
    %71 = vector.extract_strided_slice %69 {offsets = [0, 0], sizes = [1, 512], strides = [1, 1]} : vector<10x512xf32> to vector<1x512xf32>
    %72 = vector.broadcast %70 : vector<5x1xf32> to vector<5x512xf32>
    %73 = vector.broadcast %71 : vector<1x512xf32> to vector<5x512xf32>
    %74 = arith.mulf %72, %73 : vector<5x512xf32>
    %75 = vector.extract_strided_slice %3 {offsets = [0, 1], sizes = [5, 1], strides = [1, 1]} : vector<5x10xf32> to vector<5x1xf32>
    %76 = vector.extract_strided_slice %69 {offsets = [1, 0], sizes = [1, 512], strides = [1, 1]} : vector<10x512xf32> to vector<1x512xf32>
    %77 = vector.broadcast %75 : vector<5x1xf32> to vector<5x512xf32>
    %78 = vector.broadcast %76 : vector<1x512xf32> to vector<5x512xf32>
    %79 = arith.mulf %77, %78 : vector<5x512xf32>
    %80 = arith.addf %74, %79 : vector<5x512xf32>
    %81 = vector.extract_strided_slice %3 {offsets = [0, 2], sizes = [5, 1], strides = [1, 1]} : vector<5x10xf32> to vector<5x1xf32>
    %82 = vector.extract_strided_slice %69 {offsets = [2, 0], sizes = [1, 512], strides = [1, 1]} : vector<10x512xf32> to vector<1x512xf32>
    %83 = vector.broadcast %81 : vector<5x1xf32> to vector<5x512xf32>
    %84 = vector.broadcast %82 : vector<1x512xf32> to vector<5x512xf32>
    %85 = arith.mulf %83, %84 : vector<5x512xf32>
    %86 = arith.addf %80, %85 : vector<5x512xf32>
    %87 = vector.extract_strided_slice %3 {offsets = [0, 3], sizes = [5, 1], strides = [1, 1]} : vector<5x10xf32> to vector<5x1xf32>
    %88 = vector.extract_strided_slice %69 {offsets = [3, 0], sizes = [1, 512], strides = [1, 1]} : vector<10x512xf32> to vector<1x512xf32>
    %89 = vector.broadcast %87 : vector<5x1xf32> to vector<5x512xf32>
    %90 = vector.broadcast %88 : vector<1x512xf32> to vector<5x512xf32>
    %91 = arith.mulf %89, %90 : vector<5x512xf32>
    %92 = arith.addf %86, %91 : vector<5x512xf32>
    %93 = vector.extract_strided_slice %3 {offsets = [0, 4], sizes = [5, 1], strides = [1, 1]} : vector<5x10xf32> to vector<5x1xf32>
    %94 = vector.extract_strided_slice %69 {offsets = [4, 0], sizes = [1, 512], strides = [1, 1]} : vector<10x512xf32> to vector<1x512xf32>
    %95 = vector.broadcast %93 : vector<5x1xf32> to vector<5x512xf32>
    %96 = vector.broadcast %94 : vector<1x512xf32> to vector<5x512xf32>
    %97 = arith.mulf %95, %96 : vector<5x512xf32>
    %98 = arith.addf %92, %97 : vector<5x512xf32>
    %99 = vector.extract_strided_slice %3 {offsets = [0, 5], sizes = [5, 1], strides = [1, 1]} : vector<5x10xf32> to vector<5x1xf32>
    %100 = vector.extract_strided_slice %69 {offsets = [5, 0], sizes = [1, 512], strides = [1, 1]} : vector<10x512xf32> to vector<1x512xf32>
    %101 = vector.broadcast %99 : vector<5x1xf32> to vector<5x512xf32>
    %102 = vector.broadcast %100 : vector<1x512xf32> to vector<5x512xf32>
    %103 = arith.mulf %101, %102 : vector<5x512xf32>
    %104 = arith.addf %98, %103 : vector<5x512xf32>
    %105 = vector.extract_strided_slice %3 {offsets = [0, 6], sizes = [5, 1], strides = [1, 1]} : vector<5x10xf32> to vector<5x1xf32>
    %106 = vector.extract_strided_slice %69 {offsets = [6, 0], sizes = [1, 512], strides = [1, 1]} : vector<10x512xf32> to vector<1x512xf32>
    %107 = vector.broadcast %105 : vector<5x1xf32> to vector<5x512xf32>
    %108 = vector.broadcast %106 : vector<1x512xf32> to vector<5x512xf32>
    %109 = arith.mulf %107, %108 : vector<5x512xf32>
    %110 = arith.addf %104, %109 : vector<5x512xf32>
    %111 = vector.extract_strided_slice %3 {offsets = [0, 7], sizes = [5, 1], strides = [1, 1]} : vector<5x10xf32> to vector<5x1xf32>
    %112 = vector.extract_strided_slice %69 {offsets = [7, 0], sizes = [1, 512], strides = [1, 1]} : vector<10x512xf32> to vector<1x512xf32>
    %113 = vector.broadcast %111 : vector<5x1xf32> to vector<5x512xf32>
    %114 = vector.broadcast %112 : vector<1x512xf32> to vector<5x512xf32>
    %115 = arith.mulf %113, %114 : vector<5x512xf32>
    %116 = arith.addf %110, %115 : vector<5x512xf32>
    %117 = vector.extract_strided_slice %3 {offsets = [0, 8], sizes = [5, 1], strides = [1, 1]} : vector<5x10xf32> to vector<5x1xf32>
    %118 = vector.extract_strided_slice %69 {offsets = [8, 0], sizes = [1, 512], strides = [1, 1]} : vector<10x512xf32> to vector<1x512xf32>
    %119 = vector.broadcast %117 : vector<5x1xf32> to vector<5x512xf32>
    %120 = vector.broadcast %118 : vector<1x512xf32> to vector<5x512xf32>
    %121 = arith.mulf %119, %120 : vector<5x512xf32>
    %122 = arith.addf %116, %121 : vector<5x512xf32>
    %123 = vector.extract_strided_slice %3 {offsets = [0, 9], sizes = [5, 1], strides = [1, 1]} : vector<5x10xf32> to vector<5x1xf32>
    %124 = vector.extract_strided_slice %69 {offsets = [9, 0], sizes = [1, 512], strides = [1, 1]} : vector<10x512xf32> to vector<1x512xf32>
    %125 = vector.broadcast %123 : vector<5x1xf32> to vector<5x512xf32>
    %126 = vector.broadcast %124 : vector<1x512xf32> to vector<5x512xf32>
    %127 = arith.mulf %125, %126 : vector<5x512xf32>
    %128 = arith.addf %122, %127 : vector<5x512xf32>
    %129 = vector.broadcast %4 : vector<5x1xf32> to vector<5x512xf32>
    %130 = arith.addf %128, %129 : vector<5x512xf32>
    %cst_13 = arith.constant 0.000000e+00 : f32
    %131 = vector.broadcast %cst_13 : f32 to vector<5x512xf32>
    %132 = arith.maximumf %130, %131 : vector<5x512xf32>
    %133 = vector.extract_strided_slice %5 {offsets = [0, 0], sizes = [1, 1], strides = [1, 1]} : vector<1x5xf32> to vector<1x1xf32>
    %134 = vector.extract_strided_slice %132 {offsets = [0, 0], sizes = [1, 512], strides = [1, 1]} : vector<5x512xf32> to vector<1x512xf32>
    %135 = vector.broadcast %133 : vector<1x1xf32> to vector<1x512xf32>
    %136 = arith.mulf %135, %134 : vector<1x512xf32>
    %137 = vector.extract_strided_slice %5 {offsets = [0, 1], sizes = [1, 1], strides = [1, 1]} : vector<1x5xf32> to vector<1x1xf32>
    %138 = vector.extract_strided_slice %132 {offsets = [1, 0], sizes = [1, 512], strides = [1, 1]} : vector<5x512xf32> to vector<1x512xf32>
    %139 = vector.broadcast %137 : vector<1x1xf32> to vector<1x512xf32>
    %140 = arith.mulf %139, %138 : vector<1x512xf32>
    %141 = arith.addf %136, %140 : vector<1x512xf32>
    %142 = vector.extract_strided_slice %5 {offsets = [0, 2], sizes = [1, 1], strides = [1, 1]} : vector<1x5xf32> to vector<1x1xf32>
    %143 = vector.extract_strided_slice %132 {offsets = [2, 0], sizes = [1, 512], strides = [1, 1]} : vector<5x512xf32> to vector<1x512xf32>
    %144 = vector.broadcast %142 : vector<1x1xf32> to vector<1x512xf32>
    %145 = arith.mulf %144, %143 : vector<1x512xf32>
    %146 = arith.addf %141, %145 : vector<1x512xf32>
    %147 = vector.extract_strided_slice %5 {offsets = [0, 3], sizes = [1, 1], strides = [1, 1]} : vector<1x5xf32> to vector<1x1xf32>
    %148 = vector.extract_strided_slice %132 {offsets = [3, 0], sizes = [1, 512], strides = [1, 1]} : vector<5x512xf32> to vector<1x512xf32>
    %149 = vector.broadcast %147 : vector<1x1xf32> to vector<1x512xf32>
    %150 = arith.mulf %149, %148 : vector<1x512xf32>
    %151 = arith.addf %146, %150 : vector<1x512xf32>
    %152 = vector.extract_strided_slice %5 {offsets = [0, 4], sizes = [1, 1], strides = [1, 1]} : vector<1x5xf32> to vector<1x1xf32>
    %153 = vector.extract_strided_slice %132 {offsets = [4, 0], sizes = [1, 512], strides = [1, 1]} : vector<5x512xf32> to vector<1x512xf32>
    %154 = vector.broadcast %152 : vector<1x1xf32> to vector<1x512xf32>
    %155 = arith.mulf %154, %153 : vector<1x512xf32>
    %156 = arith.addf %151, %155 : vector<1x512xf32>
    %157 = vector.broadcast %6 : vector<1x1xf32> to vector<1x512xf32>
    %158 = arith.addf %156, %157 : vector<1x512xf32>
    %cst_14 = arith.constant 0.000000e+00 : f32
    %159 = vector.broadcast %cst_14 : f32 to vector<1x512xf32>
    %160 = arith.subf %159, %158 : vector<1x512xf32>
    %161 = math.exp %160 : vector<1x512xf32>
    %cst_15 = arith.constant 1.000000e+00 : f32
    %162 = vector.broadcast %cst_15 : f32 to vector<1x512xf32>
    %163 = arith.addf %162, %161 : vector<1x512xf32>
    %164 = tpu.reciprocal %163 {approx = true} : vector<1x512xf32> -> vector<1x512xf32>
    %c0_16 = arith.constant 0 : index
    %c0_17 = arith.constant 0 : index
    %165 = vector.load %arg8[%c0_16, %c0_17] : memref<1x512xf32, #tpu.memory_space<vmem>>, vector<1x512xf32>
    tpu.vector_store %arg8[%c0_16, %c0_17], %164 {strides = array<i32>} : memref<1x512xf32, #tpu.memory_space<vmem>>, vector<1x512xf32>,
    return
  }
  func.func @transform_0(%arg0: i32) -> (i32, i32) {
    %c0_i32 = arith.constant 0 : i32
    %c0_i32_0 = arith.constant 0 : i32
    return %c0_i32, %arg0 : i32, i32
  }
  func.func @transform_1(%arg0: i32) -> (i32, i32) {
    %c0_i32 = arith.constant 0 : i32
    %c0_i32_0 = arith.constant 0 : i32
    %c0_i32_1 = arith.constant 0 : i32
    return %c0_i32, %c0_i32_0 : i32, i32
  }
  func.func @transform_2(%arg0: i32) -> (i32, i32) {
    %c0_i32 = arith.constant 0 : i32
    %c0_i32_0 = arith.constant 0 : i32
    %c0_i32_1 = arith.constant 0 : i32
    return %c0_i32, %c0_i32_0 : i32, i32
  }
  func.func @transform_3(%arg0: i32) -> (i32, i32) {
    %c0_i32 = arith.constant 0 : i32
    %c0_i32_0 = arith.constant 0 : i32
    %c0_i32_1 = arith.constant 0 : i32
    return %c0_i32, %c0_i32_0 : i32, i32
  }
  func.func @transform_4(%arg0: i32) -> (i32, i32) {
    %c0_i32 = arith.constant 0 : i32
    %c0_i32_0 = arith.constant 0 : i32
    %c0_i32_1 = arith.constant 0 : i32
    return %c0_i32, %c0_i32_0 : i32, i32
  }
  func.func @transform_5(%arg0: i32) -> (i32, i32) {
    %c0_i32 = arith.constant 0 : i32
    %c0_i32_0 = arith.constant 0 : i32
    %c0_i32_1 = arith.constant 0 : i32
    return %c0_i32, %c0_i32_0 : i32, i32
  }
  func.func @transform_6(%arg0: i32) -> (i32, i32) {
    %c0_i32 = arith.constant 0 : i32
    %c0_i32_0 = arith.constant 0 : i32
    %c0_i32_1 = arith.constant 0 : i32
    return %c0_i32, %c0_i32_0 : i32, i32
  }
  func.func @transform_7(%arg0: i32) -> (i32, i32) {
    %c0_i32 = arith.constant 0 : i32
    %c0_i32_0 = arith.constant 0 : i32
    return %c0_i32, %arg0 : i32, i32
  }
}

</mosaic_0001>

<llo_original>
// kernel: shape_discriminator.1
$region0: #{shape_discriminator.1}
  #allocation0 [shape = 'u32[]', space=smem, size = 0x4, offset = 0x4, fixed_abs, tag = 'smem constant byte address 0x4 - core index']
  #allocation1 [shape = 'u32[72,128]{1,0:T(1,128)}', space=vmem, size = 0x9000, scoped, tag = 'internal scratch']
  #allocation2 [shape = 'f32[1,1]{1,0:T(1,128)S(1)}', space=vmem, size = 0x200, scoped, tag = 'scoped memory for shape_discriminator.1']
  %s0 = inlined_call_operand.vmem [shape: f32[10,1024], index: 0, kind: input, shape index: {}]
  %s1 = inlined_call_operand.vmem [shape: f32[10,10], index: 1, kind: input, shape index: {}]
  %s2 = inlined_call_operand.vmem [shape: f32[10,1], index: 2, kind: input, shape index: {}]
  %s3 = inlined_call_operand.vmem [shape: f32[5,10], index: 3, kind: input, shape index: {}]
  %s4 = inlined_call_operand.vmem [shape: f32[5,1], index: 4, kind: input, shape index: {}]
  %s5 = inlined_call_operand.vmem [shape: f32[1,5], index: 5, kind: input, shape index: {}]
  %s6 = inlined_call_operand.<no memory space> [shape: f32[1,1], index: 6, kind: input, shape index: {}]
  %s7 = inlined_call_operand.vmem [shape: f32[1,1024], index: 7, kind: output, shape index: {}]
  %s8 = sld [smem:[#allocation0]]
  $region84: #{shape_discriminator.1} parent=0
    _
  %s10 = ssub.s32 1, %s8
  %s11 = scalar_select 0, %s10, %s8
  %v12 = vstv %s6
  %13 = vst [vmem:[#allocation2] sm:$0x1] %v12
  $region1: #{shape_discriminator.1} parent=0
    #allocation3 [shape = 'u8[65536]{0}', space=vmem, size = 0x10000, scoped, tag = 'input window, operand 0']
    loop: start=0, step=1, limit=4
    $region2: #{shape_discriminator.1} parent=1 // loop_pre_header
      _
    $region3: #{shape_discriminator.1} parent=1 // loop_header
      %s15 = sphi 0, %s19
      %p16 = scmp.ge.s32.totalorder %s15, 4
      %s25 = sphi 0, %s27
      %s28 = sphi 0, %s25
      %s29 = sphi 0, %s28
      %s45 = sphi 0, %s29
      %s49 = sphi 0, %s49
      %s51 = sphi 0, %s49
      %s52 = sphi 0, %s51
      %s66 = sphi 0, %s52
      %s70 = sphi 0, %s70
      %s72 = sphi 0, %s70
      %s73 = sphi 0, %s72
      %s87 = sphi 0, %s73
      %s91 = sphi 0, %s91
      %s93 = sphi 0, %s91
      %s94 = sphi 0, %s93
      %s108 = sphi 0, %s94
      %s112 = sphi 0, %s112
      %s114 = sphi 0, %s112
      %s115 = sphi 0, %s114
      %s129 = sphi 0, %s115
      %s133 = sphi 0, %s133
      %s135 = sphi 0, %s133
      %s136 = sphi 0, %s135
      %s150 = sphi 0, %s136
      %s154 = sphi 0, %s154
      %s156 = sphi 0, %s154
      %s157 = sphi 0, %s156
      %s171 = sphi 0, %s157
      %s177 = sphi 0, %s179
      %s180 = sphi 0, %s177
      %s181 = sphi 0, %s180
      %s197 = sphi 0, %s181
    $region4: #{shape_discriminator.1} parent=1 // loop_header_branch
      %18 = sbr.rel (%p16) target = $region8
    $region5: #{shape_discriminator.1} parent=1 // loop_body
      %s20 = ssub.s32 %s15, 1
      %s21 = ssub.s32 %s15, 2
      %s22 = sadd.s32 %s15, 1
      %s23 = ssub.s32 %s15, %s22
      %p24 = scmp.eq.s32.totalorder %s23, 0
      %s26 = sadd.s32 %s25, 1
      %s27 = scalar_select %p24, %s25, %s26
      %p30 = pneg %p24
      %p31 = scmp.eq.s32.totalorder %s15, 1
      %p32 = por %p30, %p31
      %p33 = scmp.ne.s32.totalorder %s25, %s28
      %p34 = scmp.eq.s32.totalorder %s15, 0
      %p35 = por %p33, %p34
      %p36 = scmp.ne.s32.totalorder %s25, %s28
      %p37 = scmp.eq.s32.totalorder %s20, 1
      %p38 = por %p36, %p37
      %p39 = scmp.ne.s32.totalorder %s28, %s29
      %p40 = scmp.eq.s32.totalorder %s20, 0
      %p41 = por %p39, %p40
      %p42 = scmp.ne.s32.totalorder %s28, %s29
      %p43 = scmp.eq.s32.totalorder %s21, 1
      %p44 = por %p42, %p43
      %p46 = scmp.ne.s32.totalorder %s29, %s45
      %p47 = scmp.eq.s32.totalorder %s21, 0
      %p48 = por %p46, %p47
      %s50 = sadd.s32 %s49, 1
      %p53 = scmp.eq.s32.totalorder %s15, 1
      %p54 = scmp.ne.s32.totalorder %s49, %s51
      %p55 = scmp.eq.s32.totalorder %s15, 0
      %p56 = por %p54, %p55
      %p57 = scmp.ne.s32.totalorder %s49, %s51
      %p58 = scmp.eq.s32.totalorder %s20, 1
      %p59 = por %p57, %p58
      %p60 = scmp.ne.s32.totalorder %s51, %s52
      %p61 = scmp.eq.s32.totalorder %s20, 0
      %p62 = por %p60, %p61
      %p63 = scmp.ne.s32.totalorder %s51, %s52
      %p64 = scmp.eq.s32.totalorder %s21, 1
      %p65 = por %p63, %p64
      %p67 = scmp.ne.s32.totalorder %s52, %s66
      %p68 = scmp.eq.s32.totalorder %s21, 0
      %p69 = por %p67, %p68
      %s71 = sadd.s32 %s70, 1
      %p74 = scmp.eq.s32.totalorder %s15, 1
      %p75 = scmp.ne.s32.totalorder %s70, %s72
      %p76 = scmp.eq.s32.totalorder %s15, 0
      %p77 = por %p75, %p76
      %p78 = scmp.ne.s32.totalorder %s70, %s72
      %p79 = scmp.eq.s32.totalorder %s20, 1
      %p80 = por %p78, %p79
      %p81 = scmp.ne.s32.totalorder %s72, %s73
      %p82 = scmp.eq.s32.totalorder %s20, 0
      %p83 = por %p81, %p82
      %p84 = scmp.ne.s32.totalorder %s72, %s73
      %p85 = scmp.eq.s32.totalorder %s21, 1
      %p86 = por %p84, %p85
      %p88 = scmp.ne.s32.totalorder %s73, %s87
      %p89 = scmp.eq.s32.totalorder %s21, 0
      %p90 = por %p88, %p89
      %s92 = sadd.s32 %s91, 1
      %p95 = scmp.eq.s32.totalorder %s15, 1
      %p96 = scmp.ne.s32.totalorder %s91, %s93
      %p97 = scmp.eq.s32.totalorder %s15, 0
      %p98 = por %p96, %p97
      %p99 = scmp.ne.s32.totalorder %s91, %s93
      %p100 = scmp.eq.s32.totalorder %s20, 1
      %p101 = por %p99, %p100
      %p102 = scmp.ne.s32.totalorder %s93, %s94
      %p103 = scmp.eq.s32.totalorder %s20, 0
      %p104 = por %p102, %p103
      %p105 = scmp.ne.s32.totalorder %s93, %s94
      %p106 = scmp.eq.s32.totalorder %s21, 1
      %p107 = por %p105, %p106
      %p109 = scmp.ne.s32.totalorder %s94, %s108
      %p110 = scmp.eq.s32.totalorder %s21, 0
      %p111 = por %p109, %p110
      %s113 = sadd.s32 %s112, 1
      %p116 = scmp.eq.s32.totalorder %s15, 1
      %p117 = scmp.ne.s32.totalorder %s112, %s114
      %p118 = scmp.eq.s32.totalorder %s15, 0
      %p119 = por %p117, %p118
      %p120 = scmp.ne.s32.totalorder %s112, %s114
      %p121 = scmp.eq.s32.totalorder %s20, 1
      %p122 = por %p120, %p121
      %p123 = scmp.ne.s32.totalorder %s114, %s115
      %p124 = scmp.eq.s32.totalorder %s20, 0
      %p125 = por %p123, %p124
      %p126 = scmp.ne.s32.totalorder %s114, %s115
      %p127 = scmp.eq.s32.totalorder %s21, 1
      %p128 = por %p126, %p127
      %p130 = scmp.ne.s32.totalorder %s115, %s129
      %p131 = scmp.eq.s32.totalorder %s21, 0
      %p132 = por %p130, %p131
      %s134 = sadd.s32 %s133, 1
      %p137 = scmp.eq.s32.totalorder %s15, 1
      %p138 = scmp.ne.s32.totalorder %s133, %s135
      %p139 = scmp.eq.s32.totalorder %s15, 0
      %p140 = por %p138, %p139
      %p141 = scmp.ne.s32.totalorder %s133, %s135
      %p142 = scmp.eq.s32.totalorder %s20, 1
      %p143 = por %p141, %p142
      %p144 = scmp.ne.s32.totalorder %s135, %s136
      %p145 = scmp.eq.s32.totalorder %s20, 0
      %p146 = por %p144, %p145
      %p147 = scmp.ne.s32.totalorder %s135, %s136
      %p148 = scmp.eq.s32.totalorder %s21, 1
      %p149 = por %p147, %p148
      %p151 = scmp.ne.s32.totalorder %s136, %s150
      %p152 = scmp.eq.s32.totalorder %s21, 0
      %p153 = por %p151, %p152
      %s155 = sadd.s32 %s154, 1
      %p158 = scmp.eq.s32.totalorder %s15, 1
      %p159 = scmp.ne.s32.totalorder %s154, %s156
      %p160 = scmp.eq.s32.totalorder %s15, 0
      %p161 = por %p159, %p160
      %p162 = scmp.ne.s32.totalorder %s154, %s156
      %p163 = scmp.eq.s32.totalorder %s20, 1
      %p164 = por %p162, %p163
      %p165 = scmp.ne.s32.totalorder %s156, %s157
      %p166 = scmp.eq.s32.totalorder %s20, 0
      %p167 = por %p165, %p166
      %p168 = scmp.ne.s32.totalorder %s156, %s157
      %p169 = scmp.eq.s32.totalorder %s21, 1
      %p170 = por %p168, %p169
      %p172 = scmp.ne.s32.totalorder %s157, %s171
      %p173 = scmp.eq.s32.totalorder %s21, 0
      %p174 = por %p172, %p173
      %s175 = ssub.s32 %s15, %s22
      %p176 = scmp.eq.s32.totalorder %s175, 0
      %s178 = sadd.s32 %s177, 1
      %s179 = scalar_select %p176, %s177, %s178
      %p182 = pneg %p176
      %p183 = scmp.eq.s32.totalorder %s15, 1
      %p184 = por %p182, %p183
      %p185 = scmp.ne.s32.totalorder %s177, %s180
      %p186 = scmp.eq.s32.totalorder %s15, 0
      %p187 = por %p185, %p186
      %p188 = scmp.ne.s32.totalorder %s177, %s180
      %p189 = scmp.eq.s32.totalorder %s20, 1
      %p190 = por %p188, %p189
      %p191 = scmp.ne.s32.totalorder %s180, %s181
      %p192 = scmp.eq.s32.totalorder %s20, 0
      %p193 = por %p191, %p192
      %p194 = scmp.ne.s32.totalorder %s180, %s181
      %p195 = scmp.eq.s32.totalorder %s21, 1
      %p196 = por %p194, %p195
      %p198 = scmp.ne.s32.totalorder %s181, %s197
      %p199 = scmp.eq.s32.totalorder %s21, 0
      %p200 = por %p198, %p199
      %p201 = scmp.le.s32.totalorder 1, %s15
      %p202 = scmp.lt.s32.totalorder %s15, 3
      %p203 = pnand %p201, %p202
      %p204 = pneg %p203
      // Predicated region
      $region9: #{shape_discriminator.1} parent=5 // pred_check
        _
      $region10: #{shape_discriminator.1} parent=5 // pred_check_branch
        %206 = sbr.rel (%p203) target = $region12
      $region11: #{shape_discriminator.1} parent=5 // pred_region
        %s207 = ssub.s32 %s15, 1
        // Predicated region
        $region13: #{shape_discriminator.1} parent=11 // pred_check
          %p208 = pneg %p62
        $region14: #{shape_discriminator.1} parent=11 // pred_check_branch
          %210 = sbr.rel (%p208) target = $region16
        $region15: #{shape_discriminator.1} parent=11 // pred_region
          _
        $region16: #{shape_discriminator.1} parent=11 // pred_fallthru
          _
        // Predicated region
        $region17: #{shape_discriminator.1} parent=11 // pred_check
          %p211 = pneg %p83
        $region18: #{shape_discriminator.1} parent=11 // pred_check_branch
          %213 = sbr.rel (%p211) target = $region20
        $region19: #{shape_discriminator.1} parent=11 // pred_region
          _
        $region20: #{shape_discriminator.1} parent=11 // pred_fallthru
          _
        // Predicated region
        $region21: #{shape_discriminator.1} parent=11 // pred_check
          %p214 = pneg %p104
        $region22: #{shape_discriminator.1} parent=11 // pred_check_branch
          %216 = sbr.rel (%p214) target = $region24
        $region23: #{shape_discriminator.1} parent=11 // pred_region
          _
        $region24: #{shape_discriminator.1} parent=11 // pred_fallthru
          _
        // Predicated region
        $region25: #{shape_discriminator.1} parent=11 // pred_check
          %p217 = pneg %p125
        $region26: #{shape_discriminator.1} parent=11 // pred_check_branch
          %219 = sbr.rel (%p217) target = $region28
        $region27: #{shape_discriminator.1} parent=11 // pred_region
          _
        $region28: #{shape_discriminator.1} parent=11 // pred_fallthru
          _
        // Predicated region
        $region29: #{shape_discriminator.1} parent=11 // pred_check
          %p220 = pneg %p146
        $region30: #{shape_discriminator.1} parent=11 // pred_check_branch
          %222 = sbr.rel (%p220) target = $region32
        $region31: #{shape_discriminator.1} parent=11 // pred_region
          _
        $region32: #{shape_discriminator.1} parent=11 // pred_fallthru
          _
        // Predicated region
        $region33: #{shape_discriminator.1} parent=11 // pred_check
          %p223 = pneg %p167
        $region34: #{shape_discriminator.1} parent=11 // pred_check_branch
          %225 = sbr.rel (%p223) target = $region36
        $region35: #{shape_discriminator.1} parent=11 // pred_region
          _
        $region36: #{shape_discriminator.1} parent=11 // pred_fallthru
          _
      $region12: #{shape_discriminator.1} parent=5 // pred_fallthru
        _
      %p226 = scmp.lt.s32.totalorder %s15, 2
      // Predicated region
      $region37: #{shape_discriminator.1} parent=5 // pred_check
        %p227 = pneg %p226
      $region38: #{shape_discriminator.1} parent=5 // pred_check_branch
        %229 = sbr.rel (%p227) target = $region40
      $region39: #{shape_discriminator.1} parent=5 // pred_region
        // Predicated region
        $region41: #{shape_discriminator.1} parent=39 // pred_check
          %p230 = pneg %p35
        $region42: #{shape_discriminator.1} parent=39 // pred_check_branch
          %232 = sbr.rel (%p230) target = $region44
        $region43: #{shape_discriminator.1} parent=39 // pred_region
          %s233 = sand.u32 %s25, 1
          %s234 = sand.u32 %s25, 1
          %s235 = smul.addr %s234, 64
          %s236 = scalar_lea.vmem [#allocation3], %s235
          %s237 = smul.u32 4, %s15
          %s238 = smul.addr %s237, 8
          %s239 = scalar_lea.vmem %s0, %s238
          // Predicated region
          $region45: #{shape_discriminator.1} parent=43 // pred_check
            _
          $region46: #{shape_discriminator.1} parent=43 // pred_check_branch
            %241 = sbr.rel (0) target = $region48
          $region47: #{shape_discriminator.1} parent=43 // pred_region
            // Predicated region
            $region49: #{shape_discriminator.1} parent=47 // pred_check
              _
            $region50: #{shape_discriminator.1} parent=47 // pred_check_branch
              %243 = sbr.rel (0) target = $region52
            $region51: #{shape_discriminator.1} parent=47 // pred_region
              loop: start=0, step=1, limit=1
              $region53: #{shape_discriminator.1} parent=51 // loop_pre_header
                _
              $region54: #{shape_discriminator.1} parent=51 // loop_header
                %s245 = sphi 0, %s249
                %p246 = scmp.ge.s32.totalorder %s245, 1
                %s250 = sphi %s239, %s239
                %s251 = sphi %s236, %s236
              $region55: #{shape_discriminator.1} parent=51 // loop_header_branch
                %248 = sbr.rel (%p246) target = $region59
              $region56: #{shape_discriminator.1} parent=51 // loop_body
                %v252 = vld [vmem:[%s250] sm:$0xff]
                %253 = vst [vmem:[%s251] sm:$0xff] %v252
                %v254 = vld [vmem:[%s250 + $0x8] sm:$0xff]
                %255 = vst [vmem:[%s251 + $0x8] sm:$0xff] %v254
                %v256 = vld [vmem:[%s250 + $0x10] sm:$0xff]
                %257 = vst [vmem:[%s251 + $0x10] sm:$0xff] %v256
                %v258 = vld [vmem:[%s250 + $0x18] sm:$0xff]
                %259 = vst [vmem:[%s251 + $0x18] sm:$0xff] %v258
                %v260 = vld [vmem:[%s250 + $0x40] sm:$0xff]
                %261 = vst [vmem:[%s251 + $0x20] sm:$0xff] %v260
                %v262 = vld [vmem:[%s250 + $0x48] sm:$0xff]
                %263 = vst [vmem:[%s251 + $0x28] sm:$0xff] %v262
                %v264 = vld [vmem:[%s250 + $0x50] sm:$0xff]
                %265 = vst [vmem:[%s251 + $0x30] sm:$0xff] %v264
                %v266 = vld [vmem:[%s250 + $0x58] sm:$0xff]
                %267 = vst [vmem:[%s251 + $0x38] sm:$0xff] %v266
              $region57: #{shape_discriminator.1} parent=51 // loop_footer
                %s249 = sadd.s32 1, %s245
              $region58: #{shape_discriminator.1} parent=51 // loop_footer_branch
                %244 = sbr.rel target = $region54
              $region59: #{shape_discriminator.1} parent=51 // loop_exit
                _
            $region52: #{shape_discriminator.1} parent=47 // pred_fallthru
              _
            // Predicated region
            $region60: #{shape_discriminator.1} parent=47 // pred_check
              _
            $region61: #{shape_discriminator.1} parent=47 // pred_check_branch
              %269 = sbr.rel target = $region63
            $region62: #{shape_discriminator.1} parent=47 // pred_region
              _
            $region63: #{shape_discriminator.1} parent=47 // pred_fallthru
              _
          $region48: #{shape_discriminator.1} parent=43 // pred_fallthru
            _
          %270 = vnop
        $region44: #{shape_discriminator.1} parent=39 // pred_fallthru
          _
      $region40: #{shape_discriminator.1} parent=5 // pred_fallthru
        _
      %p271 = scmp.le.s32.totalorder 1, %s15
      %p272 = scmp.lt.s32.totalorder %s15, 3
      %p273 = pnand %p271, %p272
      %p274 = pneg %p273
      // Predicated region
      $region64: #{shape_discriminator.1} parent=5 // pred_check
        _
      $region65: #{shape_discriminator.1} parent=5 // pred_check_branch
        %276 = sbr.rel (%p273) target = $region67
      $region66: #{shape_discriminator.1} parent=5 // pred_region
        %s277 = ssub.s32 %s15, 1
        %s278 = sand.u32 %s28, 1
        %s279 = sand.u32 %s28, 1
        %s280 = smul.addr %s279, 64
        %s281 = scalar_lea.vmem [#allocation3], %s280
        // Predicated region
        $region68: #{shape_discriminator.1} parent=66 // pred_check
          %p282 = pneg %p41
        $region69: #{shape_discriminator.1} parent=66 // pred_check_branch
          %284 = sbr.rel (%p282) target = $region71
        $region70: #{shape_discriminator.1} parent=66 // pred_region
          _
        $region71: #{shape_discriminator.1} parent=66 // pred_fallthru
          _
        %s285 = sand.u32 %s28, 1
        %s286 = sand.u32 %s28, 1
        %s287 = smul.addr %s286, 64
        %s288 = scalar_lea.vmem [#allocation3], %s287
        %p289 = pneg %p41
        %p290 = pneg %p38
        %p291 = pneg %p62
        %p292 = pneg %p59
        %p293 = pneg %p83
        %p294 = pneg %p80
        %p295 = pneg %p104
        %p296 = pneg %p101
        %p297 = pneg %p125
        %p298 = pneg %p122
        %p299 = pneg %p146
        %p300 = pneg %p143
        %p301 = pneg %p167
        %p302 = pneg %p164
        %p303 = pneg %p193
        %p304 = pneg %p190
        %s305 = smul.u32 4, %s20
        %p306 = scmp.lt.s32.totalorder %s305, 7
        %s307 = scalar_select %p306, %s305, 7
        %s308 = scalar_lea.vmem %s7, %s307
        %s309 = smul.u32 4, %s20
        %s310 = smul.u32 4, %s20
        %p311 = scmp.lt.s32.totalorder %s310, 7
        %s312 = scalar_select %p311, %s310, 7
        %s313 = scalar_lea.vmem %s7, %s312
        %s314 = smul.u32 4, %s20
        %v315 = vld [vmem:[%s281] sm:$0xff]
        %v316 = vld [vmem:[%s281 + $0x8] sm:$0xff]
        %v317 = vld [vmem:[%s281 + $0x10] sm:$0xff]
        %v318 = vld [vmem:[%s281 + $0x18] sm:$0xff]
        %v319 = vld [vmem:[%s281 + $0x20] sm:$0x3]
        %v320 = vld [vmem:[%s281 + $0x28] sm:$0x3]
        %v321 = vld [vmem:[%s281 + $0x30] sm:$0x3]
        %v322 = vld [vmem:[%s281 + $0x38] sm:$0x3]
        %v323 = vld [vmem:[%s1] sm:$0xff]
        %v324 = vld [vmem:[%s1 + $0x8] sm:$0x3]
        %v325 = vld [vmem:[%s2] sm:$0xff]
        %v326 = vld [vmem:[%s2 + $0x8] sm:$0x3]
        %v327 = vld [vmem:[%s3] sm:$0x1f]
        %v328 = vld [vmem:[%s4] sm:$0x1f]
        %v329 = vld [vmem:[%s5] sm:$0x1]
        %v330 = vld [vmem:[#allocation2] sm:$0x1]
        %332 = vset.pattern.permute.xlu0 0
        %333 = vperm.xlu0 %332, %v323
        %v334 = vpop.permute.xlu0 %333
        %337 = vset.pattern.permute.xlu0 0
        %338 = vperm.xlu0 %337, %v324
        %v339 = vpop.permute.xlu0 %338
        %v341 = vperm.slane %v315, 0
        %v342 = vperm.slane %v316, 0
        %v343 = vperm.slane %v317, 0
        %v344 = vperm.slane %v318, 0
        %v345 = vmul.f32 %v334, %v341
        %v346 = vmul.f32 %v334, %v342
        %v347 = vmul.f32 %v334, %v343
        %v348 = vmul.f32 %v334, %v344
        %v349 = vmul.f32 %v339, %v341
        %v350 = vmul.f32 %v339, %v342
        %v351 = vmul.f32 %v339, %v343
        %v352 = vmul.f32 %v339, %v344
        %353 = vset.pattern.permute.xlu0 1
        %354 = vperm.xlu0 %353, %v323
        %v355 = vpop.permute.xlu0 %354
        %357 = vset.pattern.permute.xlu0 1
        %358 = vperm.xlu0 %357, %v324
        %v359 = vpop.permute.xlu0 %358
        %v361 = vperm.slane %v315, 1
        %v362 = vperm.slane %v316, 1
        %v363 = vperm.slane %v317, 1
        %v364 = vperm.slane %v318, 1
        %v365 = vmul.f32 %v355, %v361
        %v366 = vmul.f32 %v355, %v362
        %v367 = vmul.f32 %v355, %v363
        %v368 = vmul.f32 %v355, %v364
        %v369 = vmul.f32 %v359, %v361
        %v370 = vmul.f32 %v359, %v362
        %v371 = vmul.f32 %v359, %v363
        %v372 = vmul.f32 %v359, %v364
        %v373 = vadd.f32 %v345, %v365
        %v374 = vadd.f32 %v346, %v366
        %v375 = vadd.f32 %v347, %v367
        %v376 = vadd.f32 %v348, %v368
        %v377 = vadd.f32 %v349, %v369
        %v378 = vadd.f32 %v350, %v370
        %v379 = vadd.f32 %v351, %v371
        %v380 = vadd.f32 %v352, %v372
        %381 = vset.pattern.permute.xlu0 2
        %382 = vperm.xlu0 %381, %v323
        %v383 = vpop.permute.xlu0 %382
        %385 = vset.pattern.permute.xlu0 2
        %386 = vperm.xlu0 %385, %v324
        %v387 = vpop.permute.xlu0 %386
        %v389 = vperm.slane %v315, 2
        %v390 = vperm.slane %v316, 2
        %v391 = vperm.slane %v317, 2
        %v392 = vperm.slane %v318, 2
        %v393 = vmul.f32 %v383, %v389
        %v394 = vmul.f32 %v383, %v390
        %v395 = vmul.f32 %v383, %v391
        %v396 = vmul.f32 %v383, %v392
        %v397 = vmul.f32 %v387, %v389
        %v398 = vmul.f32 %v387, %v390
        %v399 = vmul.f32 %v387, %v391
        %v400 = vmul.f32 %v387, %v392
        %v401 = vadd.f32 %v373, %v393
        %v402 = vadd.f32 %v374, %v394
        %v403 = vadd.f32 %v375, %v395
        %v404 = vadd.f32 %v376, %v396
        %v405 = vadd.f32 %v377, %v397
        %v406 = vadd.f32 %v378, %v398
        %v407 = vadd.f32 %v379, %v399
        %v408 = vadd.f32 %v380, %v400
        %409 = vset.pattern.permute.xlu0 3
        %410 = vperm.xlu0 %409, %v323
        %v411 = vpop.permute.xlu0 %410
        %413 = vset.pattern.permute.xlu0 3
        %414 = vperm.xlu0 %413, %v324
        %v415 = vpop.permute.xlu0 %414
        %v417 = vperm.slane %v315, 3
        %v418 = vperm.slane %v316, 3
        %v419 = vperm.slane %v317, 3
        %v420 = vperm.slane %v318, 3
        %v421 = vmul.f32 %v411, %v417
        %v422 = vmul.f32 %v411, %v418
        %v423 = vmul.f32 %v411, %v419
        %v424 = vmul.f32 %v411, %v420
        %v425 = vmul.f32 %v415, %v417
        %v426 = vmul.f32 %v415, %v418
        %v427 = vmul.f32 %v415, %v419
        %v428 = vmul.f32 %v415, %v420
        %v429 = vadd.f32 %v401, %v421
        %v430 = vadd.f32 %v402, %v422
        %v431 = vadd.f32 %v403, %v423
        %v432 = vadd.f32 %v404, %v424
        %v433 = vadd.f32 %v405, %v425
        %v434 = vadd.f32 %v406, %v426
        %v435 = vadd.f32 %v407, %v427
        %v436 = vadd.f32 %v408, %v428
        %437 = vset.pattern.permute.xlu0 4
        %438 = vperm.xlu0 %437, %v323
        %v439 = vpop.permute.xlu0 %438
        %441 = vset.pattern.permute.xlu0 4
        %442 = vperm.xlu0 %441, %v324
        %v443 = vpop.permute.xlu0 %442
        %v445 = vperm.slane %v315, 4
        %v446 = vperm.slane %v316, 4
        %v447 = vperm.slane %v317, 4
        %v448 = vperm.slane %v318, 4
        %v449 = vmul.f32 %v439, %v445
        %v450 = vmul.f32 %v439, %v446
        %v451 = vmul.f32 %v439, %v447
        %v452 = vmul.f32 %v439, %v448
        %v453 = vmul.f32 %v443, %v445
        %v454 = vmul.f32 %v443, %v446
        %v455 = vmul.f32 %v443, %v447
        %v456 = vmul.f32 %v443, %v448
        %v457 = vadd.f32 %v429, %v449
        %v458 = vadd.f32 %v430, %v450
        %v459 = vadd.f32 %v431, %v451
        %v460 = vadd.f32 %v432, %v452
        %v461 = vadd.f32 %v433, %v453
        %v462 = vadd.f32 %v434, %v454
        %v463 = vadd.f32 %v435, %v455
        %v464 = vadd.f32 %v436, %v456
        %465 = vset.pattern.permute.xlu0 5
        %466 = vperm.xlu0 %465, %v323
        %v467 = vpop.permute.xlu0 %466
        %469 = vset.pattern.permute.xlu0 5
        %470 = vperm.xlu0 %469, %v324
        %v471 = vpop.permute.xlu0 %470
        %v473 = vperm.slane %v315, 5
        %v474 = vperm.slane %v316, 5
        %v475 = vperm.slane %v317, 5
        %v476 = vperm.slane %v318, 5
        %v477 = vmul.f32 %v467, %v473
        %v478 = vmul.f32 %v467, %v474
        %v479 = vmul.f32 %v467, %v475
        %v480 = vmul.f32 %v467, %v476
        %v481 = vmul.f32 %v471, %v473
        %v482 = vmul.f32 %v471, %v474
        %v483 = vmul.f32 %v471, %v475
        %v484 = vmul.f32 %v471, %v476
        %v485 = vadd.f32 %v457, %v477
        %v486 = vadd.f32 %v458, %v478
        %v487 = vadd.f32 %v459, %v479
        %v488 = vadd.f32 %v460, %v480
        %v489 = vadd.f32 %v461, %v481
        %v490 = vadd.f32 %v462, %v482
        %v491 = vadd.f32 %v463, %v483
        %v492 = vadd.f32 %v464, %v484
        %493 = vset.pattern.permute.xlu0 6
        %494 = vperm.xlu0 %493, %v323
        %v495 = vpop.permute.xlu0 %494
        %497 = vset.pattern.permute.xlu0 6
        %498 = vperm.xlu0 %497, %v324
        %v499 = vpop.permute.xlu0 %498
        %v501 = vperm.slane %v315, 6
        %v502 = vperm.slane %v316, 6
        %v503 = vperm.slane %v317, 6
        %v504 = vperm.slane %v318, 6
        %v505 = vmul.f32 %v495, %v501
        %v506 = vmul.f32 %v495, %v502
        %v507 = vmul.f32 %v495, %v503
        %v508 = vmul.f32 %v495, %v504
        %v509 = vmul.f32 %v499, %v501
        %v510 = vmul.f32 %v499, %v502
        %v511 = vmul.f32 %v499, %v503
        %v512 = vmul.f32 %v499, %v504
        %v513 = vadd.f32 %v485, %v505
        %v514 = vadd.f32 %v486, %v506
        %v515 = vadd.f32 %v487, %v507
        %v516 = vadd.f32 %v488, %v508
        %v517 = vadd.f32 %v489, %v509
        %v518 = vadd.f32 %v490, %v510
        %v519 = vadd.f32 %v491, %v511
        %v520 = vadd.f32 %v492, %v512
        %521 = vset.pattern.permute.xlu0 7
        %522 = vperm.xlu0 %521, %v323
        %v523 = vpop.permute.xlu0 %522
        %525 = vset.pattern.permute.xlu0 7
        %526 = vperm.xlu0 %525, %v324
        %v527 = vpop.permute.xlu0 %526
        %v529 = vperm.slane %v315, 7
        %v530 = vperm.slane %v316, 7
        %v531 = vperm.slane %v317, 7
        %v532 = vperm.slane %v318, 7
        %v533 = vmul.f32 %v523, %v529
        %v534 = vmul.f32 %v523, %v530
        %v535 = vmul.f32 %v523, %v531
        %v536 = vmul.f32 %v523, %v532
        %v537 = vmul.f32 %v527, %v529
        %v538 = vmul.f32 %v527, %v530
        %v539 = vmul.f32 %v527, %v531
        %v540 = vmul.f32 %v527, %v532
        %v541 = vadd.f32 %v513, %v533
        %v542 = vadd.f32 %v514, %v534
        %v543 = vadd.f32 %v515, %v535
        %v544 = vadd.f32 %v516, %v536
        %v545 = vadd.f32 %v517, %v537
        %v546 = vadd.f32 %v518, %v538
        %v547 = vadd.f32 %v519, %v539
        %v548 = vadd.f32 %v520, %v540
        %549 = vset.pattern.permute.xlu0 8
        %550 = vperm.xlu0 %549, %v323
        %v551 = vpop.permute.xlu0 %550
        %553 = vset.pattern.permute.xlu0 8
        %554 = vperm.xlu0 %553, %v324
        %v555 = vpop.permute.xlu0 %554
        %v557 = vperm.slane %v319, 0
        %v558 = vperm.slane %v320, 0
        %v559 = vperm.slane %v321, 0
        %v560 = vperm.slane %v322, 0
        %v561 = vmul.f32 %v551, %v557
        %v562 = vmul.f32 %v551, %v558
        %v563 = vmul.f32 %v551, %v559
        %v564 = vmul.f32 %v551, %v560
        %v565 = vmul.f32 %v555, %v557
        %v566 = vmul.f32 %v555, %v558
        %v567 = vmul.f32 %v555, %v559
        %v568 = vmul.f32 %v555, %v560
        %v569 = vadd.f32 %v541, %v561
        %v570 = vadd.f32 %v542, %v562
        %v571 = vadd.f32 %v543, %v563
        %v572 = vadd.f32 %v544, %v564
        %v573 = vadd.f32 %v545, %v565
        %v574 = vadd.f32 %v546, %v566
        %v575 = vadd.f32 %v547, %v567
        %v576 = vadd.f32 %v548, %v568
        %577 = vset.pattern.permute.xlu0 9
        %578 = vperm.xlu0 %577, %v323
        %v579 = vpop.permute.xlu0 %578
        %581 = vset.pattern.permute.xlu0 9
        %582 = vperm.xlu0 %581, %v324
        %v583 = vpop.permute.xlu0 %582
        %v585 = vperm.slane %v319, 1
        %v586 = vperm.slane %v320, 1
        %v587 = vperm.slane %v321, 1
        %v588 = vperm.slane %v322, 1
        %v589 = vmul.f32 %v579, %v585
        %v590 = vmul.f32 %v579, %v586
        %v591 = vmul.f32 %v579, %v587
        %v592 = vmul.f32 %v579, %v588
        %v593 = vmul.f32 %v583, %v585
        %v594 = vmul.f32 %v583, %v586
        %v595 = vmul.f32 %v583, %v587
        %v596 = vmul.f32 %v583, %v588
        %v597 = vadd.f32 %v569, %v589
        %v598 = vadd.f32 %v570, %v590
        %v599 = vadd.f32 %v571, %v591
        %v600 = vadd.f32 %v572, %v592
        %v601 = vadd.f32 %v573, %v593
        %v602 = vadd.f32 %v574, %v594
        %v603 = vadd.f32 %v575, %v595
        %v604 = vadd.f32 %v576, %v596
        %606 = vset.pattern.permute.xlu0 0
        %607 = vperm.xlu0 %606, %v325
        %v608 = vpop.permute.xlu0 %607
        %611 = vset.pattern.permute.xlu0 0
        %612 = vperm.xlu0 %611, %v326
        %v613 = vpop.permute.xlu0 %612
        %v615 = vadd.f32 %v597, %v608
        %v616 = vadd.f32 %v598, %v608
        %v617 = vadd.f32 %v599, %v608
        %v618 = vadd.f32 %v600, %v608
        %v619 = vadd.f32 %v601, %v613
        %v620 = vadd.f32 %v602, %v613
        %v621 = vadd.f32 %v603, %v613
        %v622 = vadd.f32 %v604, %v613
        %v623 = vmax.f32 %v615, 0.0
        %v624 = vmax.f32 %v616, 0.0
        %v625 = vmax.f32 %v617, 0.0
        %v626 = vmax.f32 %v618, 0.0
        %v627 = vmax.f32 %v619, 0.0
        %v628 = vmax.f32 %v620, 0.0
        %v629 = vmax.f32 %v621, 0.0
        %v630 = vmax.f32 %v622, 0.0
        %632 = vset.pattern.permute.xlu0 0
        %633 = vperm.xlu0 %632, %v327
        %v634 = vpop.permute.xlu0 %633
        %v636 = vperm.slane %v623, 0
        %v637 = vperm.slane %v624, 0
        %v638 = vperm.slane %v625, 0
        %v639 = vperm.slane %v626, 0
        %v640 = vmul.f32 %v634, %v636
        %v641 = vmul.f32 %v634, %v637
        %v642 = vmul.f32 %v634, %v638
        %v643 = vmul.f32 %v634, %v639
        %644 = vset.pattern.permute.xlu0 1
        %645 = vperm.xlu0 %644, %v327
        %v646 = vpop.permute.xlu0 %645
        %v648 = vperm.slane %v623, 1
        %v649 = vperm.slane %v624, 1
        %v650 = vperm.slane %v625, 1
        %v651 = vperm.slane %v626, 1
        %v652 = vmul.f32 %v646, %v648
        %v653 = vmul.f32 %v646, %v649
        %v654 = vmul.f32 %v646, %v650
        %v655 = vmul.f32 %v646, %v651
        %v656 = vadd.f32 %v640, %v652
        %v657 = vadd.f32 %v641, %v653
        %v658 = vadd.f32 %v642, %v654
        %v659 = vadd.f32 %v643, %v655
        %660 = vset.pattern.permute.xlu0 2
        %661 = vperm.xlu0 %660, %v327
        %v662 = vpop.permute.xlu0 %661
        %v664 = vperm.slane %v623, 2
        %v665 = vperm.slane %v624, 2
        %v666 = vperm.slane %v625, 2
        %v667 = vperm.slane %v626, 2
        %v668 = vmul.f32 %v662, %v664
        %v669 = vmul.f32 %v662, %v665
        %v670 = vmul.f32 %v662, %v666
        %v671 = vmul.f32 %v662, %v667
        %v672 = vadd.f32 %v656, %v668
        %v673 = vadd.f32 %v657, %v669
        %v674 = vadd.f32 %v658, %v670
        %v675 = vadd.f32 %v659, %v671
        %676 = vset.pattern.permute.xlu0 3
        %677 = vperm.xlu0 %676, %v327
        %v678 = vpop.permute.xlu0 %677
        %v680 = vperm.slane %v623, 3
        %v681 = vperm.slane %v624, 3
        %v682 = vperm.slane %v625, 3
        %v683 = vperm.slane %v626, 3
        %v684 = vmul.f32 %v678, %v680
        %v685 = vmul.f32 %v678, %v681
        %v686 = vmul.f32 %v678, %v682
        %v687 = vmul.f32 %v678, %v683
        %v688 = vadd.f32 %v672, %v684
        %v689 = vadd.f32 %v673, %v685
        %v690 = vadd.f32 %v674, %v686
        %v691 = vadd.f32 %v675, %v687
        %692 = vset.pattern.permute.xlu0 4
        %693 = vperm.xlu0 %692, %v327
        %v694 = vpop.permute.xlu0 %693
        %v696 = vperm.slane %v623, 4
        %v697 = vperm.slane %v624, 4
        %v698 = vperm.slane %v625, 4
        %v699 = vperm.slane %v626, 4
        %v700 = vmul.f32 %v694, %v696
        %v701 = vmul.f32 %v694, %v697
        %v702 = vmul.f32 %v694, %v698
        %v703 = vmul.f32 %v694, %v699
        %v704 = vadd.f32 %v688, %v700
        %v705 = vadd.f32 %v689, %v701
        %v706 = vadd.f32 %v690, %v702
        %v707 = vadd.f32 %v691, %v703
        %708 = vset.pattern.permute.xlu0 5
        %709 = vperm.xlu0 %708, %v327
        %v710 = vpop.permute.xlu0 %709
        %v712 = vperm.slane %v623, 5
        %v713 = vperm.slane %v624, 5
        %v714 = vperm.slane %v625, 5
        %v715 = vperm.slane %v626, 5
        %v716 = vmul.f32 %v710, %v712
        %v717 = vmul.f32 %v710, %v713
        %v718 = vmul.f32 %v710, %v714
        %v719 = vmul.f32 %v710, %v715
        %v720 = vadd.f32 %v704, %v716
        %v721 = vadd.f32 %v705, %v717
        %v722 = vadd.f32 %v706, %v718
        %v723 = vadd.f32 %v707, %v719
        %724 = vset.pattern.permute.xlu0 6
        %725 = vperm.xlu0 %724, %v327
        %v726 = vpop.permute.xlu0 %725
        %v728 = vperm.slane %v623, 6
        %v729 = vperm.slane %v624, 6
        %v730 = vperm.slane %v625, 6
        %v731 = vperm.slane %v626, 6
        %v732 = vmul.f32 %v726, %v728
        %v733 = vmul.f32 %v726, %v729
        %v734 = vmul.f32 %v726, %v730
        %v735 = vmul.f32 %v726, %v731
        %v736 = vadd.f32 %v720, %v732
        %v737 = vadd.f32 %v721, %v733
        %v738 = vadd.f32 %v722, %v734
        %v739 = vadd.f32 %v723, %v735
        %740 = vset.pattern.permute.xlu0 7
        %741 = vperm.xlu0 %740, %v327
        %v742 = vpop.permute.xlu0 %741
        %v744 = vperm.slane %v623, 7
        %v745 = vperm.slane %v624, 7
        %v746 = vperm.slane %v625, 7
        %v747 = vperm.slane %v626, 7
        %v748 = vmul.f32 %v742, %v744
        %v749 = vmul.f32 %v742, %v745
        %v750 = vmul.f32 %v742, %v746
        %v751 = vmul.f32 %v742, %v747
        %v752 = vadd.f32 %v736, %v748
        %v753 = vadd.f32 %v737, %v749
        %v754 = vadd.f32 %v738, %v750
        %v755 = vadd.f32 %v739, %v751
        %756 = vset.pattern.permute.xlu0 8
        %757 = vperm.xlu0 %756, %v327
        %v758 = vpop.permute.xlu0 %757
        %v760 = vperm.slane %v627, 0
        %v761 = vperm.slane %v628, 0
        %v762 = vperm.slane %v629, 0
        %v763 = vperm.slane %v630, 0
        %v764 = vmul.f32 %v758, %v760
        %v765 = vmul.f32 %v758, %v761
        %v766 = vmul.f32 %v758, %v762
        %v767 = vmul.f32 %v758, %v763
        %v768 = vadd.f32 %v752, %v764
        %v769 = vadd.f32 %v753, %v765
        %v770 = vadd.f32 %v754, %v766
        %v771 = vadd.f32 %v755, %v767
        %772 = vset.pattern.permute.xlu0 9
        %773 = vperm.xlu0 %772, %v327
        %v774 = vpop.permute.xlu0 %773
        %v776 = vperm.slane %v627, 1
        %v777 = vperm.slane %v628, 1
        %v778 = vperm.slane %v629, 1
        %v779 = vperm.slane %v630, 1
        %v780 = vmul.f32 %v774, %v776
        %v781 = vmul.f32 %v774, %v777
        %v782 = vmul.f32 %v774, %v778
        %v783 = vmul.f32 %v774, %v779
        %v784 = vadd.f32 %v768, %v780
        %v785 = vadd.f32 %v769, %v781
        %v786 = vadd.f32 %v770, %v782
        %v787 = vadd.f32 %v771, %v783
        %789 = vset.pattern.permute.xlu0 0
        %790 = vperm.xlu0 %789, %v328
        %v791 = vpop.permute.xlu0 %790
        %v793 = vadd.f32 %v784, %v791
        %v794 = vadd.f32 %v785, %v791
        %v795 = vadd.f32 %v786, %v791
        %v796 = vadd.f32 %v787, %v791
        %v797 = vmax.f32 %v793, 0.0
        %v798 = vmax.f32 %v794, 0.0
        %v799 = vmax.f32 %v795, 0.0
        %v800 = vmax.f32 %v796, 0.0
        %802 = vset.pattern.permute.xlu0 0
        %803 = vperm.xlu0 %802, %v329
        %v804 = vpop.permute.xlu0 %803
        %v806 = vperm.slane %v804, 0
        %v807 = vmul.f32 %v806, %v797
        %v808 = vmul.f32 %v806, %v798
        %v809 = vmul.f32 %v806, %v799
        %v810 = vmul.f32 %v806, %v800
        %811 = vset.pattern.permute.xlu0 1
        %812 = vperm.xlu0 %811, %v329
        %v813 = vpop.permute.xlu0 %812
        %v815 = vperm.slane %v813, 0
        %v816 = vmul.f32 %v815, %v797
        %v817 = vmul.f32 %v815, %v798
        %v818 = vmul.f32 %v815, %v799
        %v819 = vmul.f32 %v815, %v800
        %v824 = vrot.slane %v816, 1
        %v825 = vrot.slane %v817, 1
        %v826 = vrot.slane %v818, 1
        %v827 = vrot.slane %v819, 1
        %v832 = vadd.f32 %v807, %v824
        %v833 = vadd.f32 %v808, %v825
        %v834 = vadd.f32 %v809, %v826
        %v835 = vadd.f32 %v810, %v827
        %836 = vset.pattern.permute.xlu0 2
        %837 = vperm.xlu0 %836, %v329
        %v838 = vpop.permute.xlu0 %837
        %v840 = vperm.slane %v838, 0
        %v841 = vmul.f32 %v840, %v797
        %v842 = vmul.f32 %v840, %v798
        %v843 = vmul.f32 %v840, %v799
        %v844 = vmul.f32 %v840, %v800
        %v849 = vrot.slane %v841, 2
        %v850 = vrot.slane %v842, 2
        %v851 = vrot.slane %v843, 2
        %v852 = vrot.slane %v844, 2
        %v857 = vadd.f32 %v832, %v849
        %v858 = vadd.f32 %v833, %v850
        %v859 = vadd.f32 %v834, %v851
        %v860 = vadd.f32 %v835, %v852
        %861 = vset.pattern.permute.xlu0 3
        %862 = vperm.xlu0 %861, %v329
        %v863 = vpop.permute.xlu0 %862
        %v865 = vperm.slane %v863, 0
        %v866 = vmul.f32 %v865, %v797
        %v867 = vmul.f32 %v865, %v798
        %v868 = vmul.f32 %v865, %v799
        %v869 = vmul.f32 %v865, %v800
        %v874 = vrot.slane %v866, 3
        %v875 = vrot.slane %v867, 3
        %v876 = vrot.slane %v868, 3
        %v877 = vrot.slane %v869, 3
        %v882 = vadd.f32 %v857, %v874
        %v883 = vadd.f32 %v858, %v875
        %v884 = vadd.f32 %v859, %v876
        %v885 = vadd.f32 %v860, %v877
        %886 = vset.pattern.permute.xlu0 4
        %887 = vperm.xlu0 %886, %v329
        %v888 = vpop.permute.xlu0 %887
        %v890 = vperm.slane %v888, 0
        %v891 = vmul.f32 %v890, %v797
        %v892 = vmul.f32 %v890, %v798
        %v893 = vmul.f32 %v890, %v799
        %v894 = vmul.f32 %v890, %v800
        %v899 = vrot.slane %v891, 4
        %v900 = vrot.slane %v892, 4
        %v901 = vrot.slane %v893, 4
        %v902 = vrot.slane %v894, 4
        %v907 = vadd.f32 %v882, %v899
        %v908 = vadd.f32 %v883, %v900
        %v909 = vadd.f32 %v884, %v901
        %v910 = vadd.f32 %v885, %v902
        %912 = vset.pattern.permute.xlu0 0
        %913 = vperm.xlu0 %912, %v330
        %v914 = vpop.permute.xlu0 %913
        %v916 = vperm.slane %v914, 0
        %v917 = vadd.f32 %v907, %v916
        %v918 = vadd.f32 %v908, %v916
        %v919 = vadd.f32 %v909, %v916
        %v920 = vadd.f32 %v910, %v916
        %v921 = vsub.f32 0.0, %v917
        %v922 = vsub.f32 0.0, %v918
        %v923 = vsub.f32 0.0, %v919
        %v924 = vsub.f32 0.0, %v920
        %v925 = vmul.f32 %v921, 1.442695
        %v926 = vpow.pop %v925
        %v927 = vmul.f32 %v922, 1.442695
        %v928 = vpow.pop %v927
        %v929 = vmul.f32 %v923, 1.442695
        %v930 = vpow.pop %v929
        %v931 = vmul.f32 %v924, 1.442695
        %v932 = vpow.pop %v931
        %v933 = vadd.f32 %v926, 1.0
        %v934 = vadd.f32 %v928, 1.0
        %v935 = vadd.f32 %v930, 1.0
        %v936 = vadd.f32 %v932, 1.0
        %v937 = vrcp.pop %v933
        %v938 = vrcp.pop %v934
        %v939 = vrcp.pop %v935
        %v940 = vrcp.pop %v936
        %v945 = vrot.slane %v938, 7
        %v946 = vrot.slane %v939, 6
        %v947 = vrot.slane %v940, 5
        %vm948 = vcmask 1040384
        %v949 = vsel %vm948, %v937, %v945
        %vm950 = vcmask 1042434
        %v951 = vsel %vm950, %v946, %v947
        %vm952 = vcmask 1041408
        %v953 = vsel %vm952, %v949, %v951
        %v955 = vlaneseq
        %vm956 = vcmp.ge.s32.totalorder %v955, 0
        %vm957 = vcmp.lt.s32.totalorder %v955, 512
        %vm958 = vmand %vm956, %vm957
        %959 = vst.msk [vmem:[%s313] sm:$0xf] %vm958, %v953
        %s960 = smul.u32 4, %s20
        %p961 = scmp.lt.s32.totalorder %s960, 7
        %s962 = scalar_select %p961, %s960, 7
        %s963 = scalar_lea.vmem %s7, %s962
        // Predicated region
        $region72: #{shape_discriminator.1} parent=66 // pred_check
          %p964 = pneg %p190
        $region73: #{shape_discriminator.1} parent=66 // pred_check_branch
          %966 = sbr.rel (%p964) target = $region75
        $region74: #{shape_discriminator.1} parent=66 // pred_region
          %s967 = smul.u32 4, %s20
        $region75: #{shape_discriminator.1} parent=66 // pred_fallthru
          _
      $region67: #{shape_discriminator.1} parent=5 // pred_fallthru
        _
      %p968 = scmp.le.s32.totalorder 2, %s15
      // Predicated region
      $region76: #{shape_discriminator.1} parent=5 // pred_check
        %p969 = pneg %p968
      $region77: #{shape_discriminator.1} parent=5 // pred_check_branch
        %971 = sbr.rel (%p969) target = $region79
      $region78: #{shape_discriminator.1} parent=5 // pred_region
        %s972 = ssub.s32 %s15, 2
        // Predicated region
        $region80: #{shape_discriminator.1} parent=78 // pred_check
          %p973 = pneg %p196
        $region81: #{shape_discriminator.1} parent=78 // pred_check_branch
          %975 = sbr.rel (%p973) target = $region83
        $region82: #{shape_discriminator.1} parent=78 // pred_region
          %s976 = smul.u32 4, %s21
          %p977 = scmp.lt.s32.totalorder %s976, 7
          %s978 = scalar_select %p977, %s976, 7
          %s979 = scalar_lea.vmem %s7, %s978
        $region83: #{shape_discriminator.1} parent=78 // pred_fallthru
          _
      $region79: #{shape_discriminator.1} parent=5 // pred_fallthru
        _
    $region6: #{shape_discriminator.1} parent=1 // loop_footer
      %s19 = sadd.s32 1, %s15
    $region7: #{shape_discriminator.1} parent=1 // loop_footer_branch
      %14 = sbr.rel target = $region3
    $region8: #{shape_discriminator.1} parent=1 // loop_exit
      _

</llo_original>
